<compile_context>
chip_gen: v7x
topology: tpu7x:2x2x1
jax: 0.10.0
libtpu: 0.0.40
codegen_flags: <defaults>
</compile_context>

<pallas_src>
from functools import partial

import jax
import jax.numpy as jnp
from jax.experimental import pallas as pl
from jax.experimental.pallas import tpu as pltpu

FEATURE_DIM = 256
BN_EPS = 1e-5
SLAB_ROWS = 72   # rows 0-7: vectors (b1,gamma,beta,b2,b3,b4,w4row,pad); 8-71: w3 (64,8)


def relation_kernel(proto_ref, query_ref, w1t_ref, w2t_ref, slab_ref, onehot_ref,
                    rel_ref, loss_ref):
    K, F = proto_ref.shape           # (k_way, 256)
    QZ = query_ref.shape[0]          # query * k_way
    N = QZ * K                       # number of relation pairs

    # ---- fc1, factored: P = proto @ W1_top, Q = query @ W1_bot (bf16 MXU, f32 acc)
    w1_top = w1t_ref[0:F, :]                     # (256, 256) bf16, proto half of W1^T
    w1_bot = w1t_ref[F:2 * F, :]                 # (256, 256) bf16, query half of W1^T
    p = jnp.dot(proto_ref[...].astype(jnp.bfloat16), w1_top,
                preferred_element_type=jnp.float32)            # (K, 256) f32
    qv = jnp.dot(query_ref[...].astype(jnp.bfloat16), w1_bot,
                 preferred_element_type=jnp.float32)           # (QZ, 256) f32

    b1 = slab_ref[0:1, :]                        # (1, 256)
    gamma = slab_ref[1:2, :]
    beta = slab_ref[2:3, :]

    # Pair assembly in registers: h[q*K + c] = p[c] + qv[q] + b1.
    # Built from 2-D row-broadcast adds + a sublane concat (no 3-D reshape),
    # which keeps the lowering on well-trodden Mosaic paths.
    pb = p + b1                                  # (K, 256)
    h = jnp.concatenate([pb + qv[i:i + 1, :] for i in range(QZ)], axis=0)   # (N, 256)

    # ---- BatchNorm1d(256), training mode (biased batch stats), single pass
    inv_n = 1.0 / N
    mean = jnp.sum(h, axis=0, keepdims=True) * inv_n           # (1, 256)
    ex2 = jnp.sum(h * h, axis=0, keepdims=True) * inv_n
    var = ex2 - mean * mean
    h = gamma * (h - mean) * jax.lax.rsqrt(var + BN_EPS) + beta
    h = jnp.maximum(h, 0.0)                                    # ReLU

    # ---- fc2: Linear(256, 64) + ReLU (MXU, f32)
    b2 = slab_ref[3:4, 0:64]                                   # (1, 64)
    h = jnp.maximum(
        jnp.dot(h, w2t_ref[...], preferred_element_type=jnp.float32) + b2, 0.0)

    # ---- fc3: Linear(64, 8) + ReLU (MXU; w3 comes from the packed slab)
    w3 = slab_ref[8:8 + 64, 0:8]                               # (64, 8)
    b3 = slab_ref[4:5, 0:8]                                    # (1, 8)
    h = jnp.maximum(jnp.dot(h, w3, preferred_element_type=jnp.float32) + b3, 0.0)

    # ---- fc4: Linear(8, 1) + Sigmoid on the VPU (multiply + lane reduce)
    w4 = slab_ref[6:7, 0:8]                                    # (1, 8)
    b4 = slab_ref[5:6, 0:1]                                    # (1, 1)
    logits = jnp.sum(h * w4, axis=-1, keepdims=True) + b4      # (N, 1)
    rel = jax.nn.sigmoid(logits)
    rel_ref[...] = rel

    # ---- MSE loss (reduction='mean') against one-hot labels, (1,1) SMEM scalar
    diff = rel - onehot_ref[...]
    loss_ref[0, 0] = jnp.mean(diff * diff)


def init_params(key):
    """Deterministic synthetic parameters, PyTorch-default-style shapes/init."""
    def linear(k, fan_in, fan_out):
        kw, kb = jax.random.split(k)
        bound = 1.0 / jnp.sqrt(jnp.float32(fan_in))
        w = jax.random.uniform(kw, (fan_out, fan_in), jnp.float32, -bound, bound)
        b = jax.random.uniform(kb, (fan_out,), jnp.float32, -bound, bound)
        return w, b

    k1, k2, k3, k4 = jax.random.split(key, 4)
    w1, b1 = linear(k1, FEATURE_DIM * 2, 256)   # fc1.Linear
    gamma = jnp.ones((256,), jnp.float32)       # fc1.BatchNorm1d.weight
    beta = jnp.zeros((256,), jnp.float32)       # fc1.BatchNorm1d.bias
    w2, b2 = linear(k2, 256, 64)
    w3, b3 = linear(k3, 64, 8)
    w4, b4 = linear(k4, 8, 1)
    return dict(w1=w1, b1=b1, gamma=gamma, beta=beta,
                w2=w2, b2=b2, w3=w3, b3=b3, w4=w4, b4=b4)


def prepare_params(params):
    """One-time weight preparation (done outside the forward call):
    pre-transpose to (in, out), pre-cast fc1 weights to bf16 for the MXU, and
    pack every small parameter into one lane-aligned VMEM slab."""
    w1t = params["w1"].T.astype(jnp.bfloat16)        # (512, 256)  fc1 weight^T
    w2t = params["w2"].T.astype(jnp.float32)         # (256, 64)
    slab = jnp.zeros((SLAB_ROWS, FEATURE_DIM), jnp.float32)
    slab = slab.at[0, :].set(params["b1"])           # row 0: b1
    slab = slab.at[1, :].set(params["gamma"])        # row 1: BN gamma
    slab = slab.at[2, :].set(params["beta"])         # row 2: BN beta
    slab = slab.at[3, :64].set(params["b2"])         # row 3: b2
    slab = slab.at[4, :8].set(params["b3"])          # row 4: b3
    slab = slab.at[5, 0].set(params["b4"][0])        # row 5: b4 scalar
    slab = slab.at[6, :8].set(params["w4"][0, :])    # row 6: fc4 weight row (8,)
    slab = slab.at[8:8 + 64, :8].set(params["w3"].T)  # rows 8-71: fc3 weight (64,8)
    return dict(w1t=w1t, w2t=w2t, slab=slab)


@partial(jax.jit, static_argnums=(3, 4, 5))
def relation_net_forward(feat, label, prepared, k_way, n_shot, query):
    K, S, D = k_way, n_shot, FEATURE_DIM
    setsz = K * S
    QZ = query * K           # querysz
    N = QZ * K               # number of relation pairs

    # glue: prototype sum over shots, query slice, one-hot labels (torch row
    # order: pair index = q*K + c, one_hot flattened row-major matches it)
    proto = feat[:setsz].reshape(K, S, D).sum(axis=1)            # (K, D)
    queryf = feat[setsz:]                                        # (QZ, D)
    one_hot = jax.nn.one_hot(label[1], K, dtype=jnp.float32).reshape(N, 1)

    vmem = pl.BlockSpec(memory_space=pltpu.MemorySpace.VMEM)
    smem = pl.BlockSpec(memory_space=pltpu.MemorySpace.SMEM)

    rel_flat, loss = pl.pallas_call(
        relation_kernel,
        out_shape=(jax.ShapeDtypeStruct((N, 1), jnp.float32),
                   jax.ShapeDtypeStruct((1, 1), jnp.float32)),
        in_specs=[vmem] * 6,
        out_specs=(vmem, smem),
    )(proto, queryf, prepared["w1t"], prepared["w2t"], prepared["slab"], one_hot)

    relations = rel_flat.reshape(QZ, K)   # torch: relations.view(-1, class_num)
    return relations, loss[0, 0]


def reference_forward(feat, label, params, k_way, n_shot, query):
    """Pure-JAX reference mirroring the torch forward (training-mode BN)."""
    K, S, D = k_way, n_shot, FEATURE_DIM
    setsz = K * S
    QZ = query * K
    sample_features = feat[:setsz].reshape(K, S, D).sum(axis=1)
    batch_features = feat[setsz:]
    s_ext = jnp.broadcast_to(sample_features[None, :, :], (QZ, K, D))
    b_ext = jnp.broadcast_to(batch_features[:, None, :], (QZ, K, D))
    x = jnp.concatenate([s_ext, b_ext], axis=2).reshape(-1, 2 * D)

    h = x @ params["w1"].T + params["b1"]
    mean = h.mean(axis=0, keepdims=True)
    var = ((h - mean) ** 2).mean(axis=0, keepdims=True)
    h = params["gamma"] * (h - mean) / jnp.sqrt(var + BN_EPS) + params["beta"]
    h = jnp.maximum(h, 0.0)
    h = jnp.maximum(h @ params["w2"].T + params["b2"], 0.0)
    h = jnp.maximum(h @ params["w3"].T + params["b3"], 0.0)
    rel = jax.nn.sigmoid(h @ params["w4"].T + params["b4"]).reshape(-1, K)
    one_hot = jax.nn.one_hot(label[1], K, dtype=jnp.float32)
    loss = jnp.mean((rel - one_hot) ** 2)
    return rel, loss


if __name__ == "__main__":
    k_way, n_shot, query = 4, 2, 3
    setsz = k_way * n_shot          # 8
    querysz = k_way * query         # 12

    key = jax.random.PRNGKey(0)
    k_feat, k_params, k_lab = jax.random.split(key, 3)

    feat = jax.random.normal(k_feat, (setsz + querysz, FEATURE_DIM), jnp.float32)
    sample_labels = jnp.repeat(jnp.arange(k_way, dtype=jnp.int32), n_shot)
    batch_labels = jax.random.randint(k_lab, (querysz,), 0, k_way, dtype=jnp.int32)
    label = (sample_labels, batch_labels)

    params = init_params(k_params)
    prepared = prepare_params(params)   # one-time: transpose / bf16 cast / slab pack

    relations, loss = relation_net_forward(feat, label, prepared,
                                           k_way, n_shot, query)
    jax.block_until_ready((relations, loss))

    assert relations.shape == (querysz, k_way)
    assert bool(jnp.all(jnp.isfinite(relations))) and bool(jnp.isfinite(loss))

    rel_ref, loss_ref = reference_forward(feat, label, params, k_way, n_shot, query)
    assert jnp.allclose(relations, rel_ref, atol=1e-2, rtol=1e-2), \
        float(jnp.max(jnp.abs(relations - rel_ref)))
    assert jnp.allclose(loss, loss_ref, atol=1e-2, rtol=1e-2)

    # TODO(synk): BatchNorm1d running-stat updates (torch training side effect)
    # are intentionally not modeled; forward uses batch statistics only.
    print("KERNEL_OK")
</pallas_src>

<mosaic_0001>
module attributes {stable_mosaic.version = 11 : i64} {
  func.func @relation_kernel(%arg0: memref<4x256xf32, #tpu.memory_space<vmem>>, %arg1: memref<12x256xf32, #tpu.memory_space<vmem>>, %arg2: memref<512x256xbf16, #tpu.memory_space<vmem>>, %arg3: memref<256x64xf32, #tpu.memory_space<vmem>>, %arg4: memref<72x256xf32, #tpu.memory_space<vmem>>, %arg5: memref<48x1xf32, #tpu.memory_space<vmem>>, %arg6: memref<48x1xf32, #tpu.memory_space<vmem>>, %arg7: memref<1x1xf32, #tpu.memory_space<smem>>) attributes {dimension_semantics = [], scalar_prefetch = 0 : i64, scratch_operands = 0 : i64, tpu.core_type = #tpu.core_type<tc>} {
    %c0 = arith.constant 0 : index
    %c0_0 = arith.constant 0 : index
    %0 = vector.load %arg2[%c0, %c0_0] : memref<512x256xbf16, #tpu.memory_space<vmem>>, vector<256x256xbf16>
    %c256 = arith.constant 256 : index
    %c0_1 = arith.constant 0 : index
    %1 = vector.load %arg2[%c256, %c0_1] : memref<512x256xbf16, #tpu.memory_space<vmem>>, vector<256x256xbf16>
    %c0_2 = arith.constant 0 : index
    %c0_3 = arith.constant 0 : index
    %2 = vector.load %arg0[%c0_2, %c0_3] : memref<4x256xf32, #tpu.memory_space<vmem>>, vector<4x256xf32>
    %3 = arith.truncf %2 : vector<4x256xf32> to vector<4x256xbf16>
    %cst = arith.constant dense<0.000000e+00> : vector<4x256xf32>
    %4 = tpu.matmul %3, %0, %cst {dimension_numbers = #tpu.dot_dimension_numbers<[1], [0], [0], [1], [0, 0, 1, 1], [], []>} : vector<4x256xbf16>, vector<256x256xbf16>, vector<4x256xf32> -> vector<4x256xf32>
    %c0_4 = arith.constant 0 : index
    %c0_5 = arith.constant 0 : index
    %5 = vector.load %arg1[%c0_4, %c0_5] : memref<12x256xf32, #tpu.memory_space<vmem>>, vector<12x256xf32>
    %6 = arith.truncf %5 : vector<12x256xf32> to vector<12x256xbf16>
    %cst_6 = arith.constant dense<0.000000e+00> : vector<12x256xf32>
    %7 = tpu.matmul %6, %1, %cst_6 {dimension_numbers = #tpu.dot_dimension_numbers<[1], [0], [0], [1], [0, 0, 1, 1], [], []>} : vector<12x256xbf16>, vector<256x256xbf16>, vector<12x256xf32> -> vector<12x256xf32>
    %c0_7 = arith.constant 0 : index
    %c0_8 = arith.constant 0 : index
    %8 = vector.load %arg4[%c0_7, %c0_8] : memref<72x256xf32, #tpu.memory_space<vmem>>, vector<1x256xf32>
    %c1 = arith.constant 1 : index
    %c0_9 = arith.constant 0 : index
    %9 = vector.load %arg4[%c1, %c0_9] : memref<72x256xf32, #tpu.memory_space<vmem>>, vector<1x256xf32>
    %c2 = arith.constant 2 : index
    %c0_10 = arith.constant 0 : index
    %10 = vector.load %arg4[%c2, %c0_10] : memref<72x256xf32, #tpu.memory_space<vmem>>, vector<1x256xf32>
    %11 = vector.broadcast %8 : vector<1x256xf32> to vector<4x256xf32>
    %12 = arith.addf %4, %11 : vector<4x256xf32>
    %13 = vector.extract_strided_slice %7 {offsets = [0, 0], sizes = [1, 256], strides = [1, 1]} : vector<12x256xf32> to vector<1x256xf32>
    %14 = vector.broadcast %13 : vector<1x256xf32> to vector<4x256xf32>
    %15 = arith.addf %12, %14 : vector<4x256xf32>
    %16 = vector.extract_strided_slice %7 {offsets = [1, 0], sizes = [1, 256], strides = [1, 1]} : vector<12x256xf32> to vector<1x256xf32>
    %17 = vector.broadcast %16 : vector<1x256xf32> to vector<4x256xf32>
    %18 = arith.addf %12, %17 : vector<4x256xf32>
    %19 = vector.extract_strided_slice %7 {offsets = [2, 0], sizes = [1, 256], strides = [1, 1]} : vector<12x256xf32> to vector<1x256xf32>
    %20 = vector.broadcast %19 : vector<1x256xf32> to vector<4x256xf32>
    %21 = arith.addf %12, %20 : vector<4x256xf32>
    %22 = vector.extract_strided_slice %7 {offsets = [3, 0], sizes = [1, 256], strides = [1, 1]} : vector<12x256xf32> to vector<1x256xf32>
    %23 = vector.broadcast %22 : vector<1x256xf32> to vector<4x256xf32>
    %24 = arith.addf %12, %23 : vector<4x256xf32>
    %25 = vector.extract_strided_slice %7 {offsets = [4, 0], sizes = [1, 256], strides = [1, 1]} : vector<12x256xf32> to vector<1x256xf32>
    %26 = vector.broadcast %25 : vector<1x256xf32> to vector<4x256xf32>
    %27 = arith.addf %12, %26 : vector<4x256xf32>
    %28 = vector.extract_strided_slice %7 {offsets = [5, 0], sizes = [1, 256], strides = [1, 1]} : vector<12x256xf32> to vector<1x256xf32>
    %29 = vector.broadcast %28 : vector<1x256xf32> to vector<4x256xf32>
    %30 = arith.addf %12, %29 : vector<4x256xf32>
    %31 = vector.extract_strided_slice %7 {offsets = [6, 0], sizes = [1, 256], strides = [1, 1]} : vector<12x256xf32> to vector<1x256xf32>
    %32 = vector.broadcast %31 : vector<1x256xf32> to vector<4x256xf32>
    %33 = arith.addf %12, %32 : vector<4x256xf32>
    %34 = vector.extract_strided_slice %7 {offsets = [7, 0], sizes = [1, 256], strides = [1, 1]} : vector<12x256xf32> to vector<1x256xf32>
    %35 = vector.broadcast %34 : vector<1x256xf32> to vector<4x256xf32>
    %36 = arith.addf %12, %35 : vector<4x256xf32>
    %37 = vector.extract_strided_slice %7 {offsets = [8, 0], sizes = [1, 256], strides = [1, 1]} : vector<12x256xf32> to vector<1x256xf32>
    %38 = vector.broadcast %37 : vector<1x256xf32> to vector<4x256xf32>
    %39 = arith.addf %12, %38 : vector<4x256xf32>
    %40 = vector.extract_strided_slice %7 {offsets = [9, 0], sizes = [1, 256], strides = [1, 1]} : vector<12x256xf32> to vector<1x256xf32>
    %41 = vector.broadcast %40 : vector<1x256xf32> to vector<4x256xf32>
    %42 = arith.addf %12, %41 : vector<4x256xf32>
    %43 = vector.extract_strided_slice %7 {offsets = [10, 0], sizes = [1, 256], strides = [1, 1]} : vector<12x256xf32> to vector<1x256xf32>
    %44 = vector.broadcast %43 : vector<1x256xf32> to vector<4x256xf32>
    %45 = arith.addf %12, %44 : vector<4x256xf32>
    %46 = vector.extract_strided_slice %7 {offsets = [11, 0], sizes = [1, 256], strides = [1, 1]} : vector<12x256xf32> to vector<1x256xf32>
    %47 = vector.broadcast %46 : vector<1x256xf32> to vector<4x256xf32>
    %48 = arith.addf %12, %47 : vector<4x256xf32>
    %49 = tpu.concatenate %15, %18, %21, %24, %27, %30, %33, %36, %39, %42, %45, %48 in 0 : vector<4x256xf32>, vector<4x256xf32>, vector<4x256xf32>, vector<4x256xf32>, vector<4x256xf32>, vector<4x256xf32>, vector<4x256xf32>, vector<4x256xf32>, vector<4x256xf32>, vector<4x256xf32>, vector<4x256xf32>, vector<4x256xf32> -> vector<48x256xf32>
    %cst_11 = arith.constant dense<0.000000e+00> : vector<256xf32>
    %50 = vector.multi_reduction <add>, %49, %cst_11 [0] : vector<48x256xf32> to vector<256xf32>
    %51 = vector.shape_cast %50 : vector<256xf32> to vector<1x256xf32>
    %cst_12 = arith.constant 0.020833334 : f32
    %52 = vector.broadcast %cst_12 : f32 to vector<1x256xf32>
    %53 = arith.mulf %51, %52 : vector<1x256xf32>
    %54 = arith.mulf %49, %49 : vector<48x256xf32>
    %cst_13 = arith.constant dense<0.000000e+00> : vector<256xf32>
    %55 = vector.multi_reduction <add>, %54, %cst_13 [0] : vector<48x256xf32> to vector<256xf32>
    %56 = vector.shape_cast %55 : vector<256xf32> to vector<1x256xf32>
    %cst_14 = arith.constant 0.020833334 : f32
    %57 = vector.broadcast %cst_14 : f32 to vector<1x256xf32>
    %58 = arith.mulf %56, %57 : vector<1x256xf32>
    %59 = arith.mulf %53, %53 : vector<1x256xf32>
    %60 = arith.subf %58, %59 : vector<1x256xf32>
    %61 = vector.broadcast %53 : vector<1x256xf32> to vector<48x256xf32>
    %62 = arith.subf %49, %61 : vector<48x256xf32>
    %63 = vector.broadcast %9 : vector<1x256xf32> to vector<48x256xf32>
    %64 = arith.mulf %63, %62 : vector<48x256xf32>
    %cst_15 = arith.constant 9.99999974E-6 : f32
    %65 = vector.broadcast %cst_15 : f32 to vector<1x256xf32>
    %66 = arith.addf %60, %65 : vector<1x256xf32>
    %67 = math.rsqrt %66 : vector<1x256xf32>
    %68 = vector.broadcast %67 : vector<1x256xf32> to vector<48x256xf32>
    %69 = arith.mulf %64, %68 : vector<48x256xf32>
    %70 = vector.broadcast %10 : vector<1x256xf32> to vector<48x256xf32>
    %71 = arith.addf %69, %70 : vector<48x256xf32>
    %cst_16 = arith.constant 0.000000e+00 : f32
    %72 = vector.broadcast %cst_16 : f32 to vector<48x256xf32>
    %73 = arith.maximumf %71, %72 : vector<48x256xf32>
    %c3 = arith.constant 3 : index
    %c0_17 = arith.constant 0 : index
    %74 = vector.load %arg4[%c3, %c0_17] : memref<72x256xf32, #tpu.memory_space<vmem>>, vector<1x64xf32>
    %c0_18 = arith.constant 0 : index
    %c0_19 = arith.constant 0 : index
    %75 = vector.load %arg3[%c0_18, %c0_19] : memref<256x64xf32, #tpu.memory_space<vmem>>, vector<256x64xf32>
    %cst_20 = arith.constant dense<0.000000e+00> : vector<48x64xf32>
    %76 = tpu.matmul %73, %75, %cst_20 {dimension_numbers = #tpu.dot_dimension_numbers<[1], [0], [0], [1], [0, 0, 1, 1], [], []>} : vector<48x256xf32>, vector<256x64xf32>, vector<48x64xf32> -> vector<48x64xf32>
    %77 = vector.broadcast %74 : vector<1x64xf32> to vector<48x64xf32>
    %78 = arith.addf %76, %77 : vector<48x64xf32>
    %cst_21 = arith.constant 0.000000e+00 : f32
    %79 = vector.broadcast %cst_21 : f32 to vector<48x64xf32>
    %80 = arith.maximumf %78, %79 : vector<48x64xf32>
    %c8 = arith.constant 8 : index
    %c0_22 = arith.constant 0 : index
    %81 = vector.load %arg4[%c8, %c0_22] : memref<72x256xf32, #tpu.memory_space<vmem>>, vector<64x8xf32>
    %c4 = arith.constant 4 : index
    %c0_23 = arith.constant 0 : index
    %82 = vector.load %arg4[%c4, %c0_23] : memref<72x256xf32, #tpu.memory_space<vmem>>, vector<1x8xf32>
    %cst_24 = arith.constant dense<0.000000e+00> : vector<48x8xf32>
    %83 = tpu.matmul %80, %81, %cst_24 {dimension_numbers = #tpu.dot_dimension_numbers<[1], [0], [0], [1], [0, 0, 1, 1], [], []>} : vector<48x64xf32>, vector<64x8xf32>, vector<48x8xf32> -> vector<48x8xf32>
    %84 = vector.broadcast %82 : vector<1x8xf32> to vector<48x8xf32>
    %85 = arith.addf %83, %84 : vector<48x8xf32>
    %cst_25 = arith.constant 0.000000e+00 : f32
    %86 = vector.broadcast %cst_25 : f32 to vector<48x8xf32>
    %87 = arith.maximumf %85, %86 : vector<48x8xf32>
    %c6 = arith.constant 6 : index
    %c0_26 = arith.constant 0 : index
    %88 = vector.load %arg4[%c6, %c0_26] : memref<72x256xf32, #tpu.memory_space<vmem>>, vector<1x8xf32>
    %c5 = arith.constant 5 : index
    %c0_27 = arith.constant 0 : index
    %89 = vector.load %arg4[%c5, %c0_27] : memref<72x256xf32, #tpu.memory_space<vmem>>, vector<1x1xf32>
    %90 = vector.broadcast %88 : vector<1x8xf32> to vector<48x8xf32>
    %91 = arith.mulf %87, %90 : vector<48x8xf32>
    %cst_28 = arith.constant dense<0.000000e+00> : vector<48xf32>
    %92 = vector.multi_reduction <add>, %91, %cst_28 [1] : vector<48x8xf32> to vector<48xf32>
    %93 = vector.shape_cast %92 : vector<48xf32> to vector<48x1xf32>
    %94 = vector.broadcast %89 : vector<1x1xf32> to vector<48x1xf32>
    %95 = arith.addf %93, %94 : vector<48x1xf32>
    %96 = arith.negf %95 : vector<48x1xf32>
    %97 = math.exp %96 : vector<48x1xf32>
    %cst_29 = arith.constant 1.000000e+00 : f32
    %98 = vector.broadcast %cst_29 : f32 to vector<48x1xf32>
    %99 = arith.addf %98, %97 : vector<48x1xf32>
    %100 = arith.divf %98, %99 : vector<48x1xf32>
    %c0_30 = arith.constant 0 : index
    %c0_31 = arith.constant 0 : index
    %101 = vector.load %arg6[%c0_30, %c0_31] : memref<48x1xf32, #tpu.memory_space<vmem>>, vector<48x1xf32>
    tpu.vector_store %arg6[%c0_30, %c0_31], %100 {strides = array<i32>} : memref<48x1xf32, #tpu.memory_space<vmem>>, vector<48x1xf32>,
    %c0_32 = arith.constant 0 : index
    %c0_33 = arith.constant 0 : index
    %102 = vector.load %arg5[%c0_32, %c0_33] : memref<48x1xf32, #tpu.memory_space<vmem>>, vector<48x1xf32>
    %103 = arith.subf %100, %102 : vector<48x1xf32>
    %104 = arith.mulf %103, %103 : vector<48x1xf32>
    %105 = vector.shape_cast %104 : vector<48x1xf32> to vector<1x48x1xf32>
    %cst_34 = arith.constant dense<0.000000e+00> : vector<1xf32>
    %106 = vector.multi_reduction <add>, %105, %cst_34 [1, 2] : vector<1x48x1xf32> to vector<1xf32>
    %107 = vector.shape_cast %106 : vector<1xf32> to vector<1x1x1xf32>
    %108 = vector.extract %107[0, 0, 0] : f32 from vector<1x1x1xf32>
    %cst_35 = arith.constant 4.800000e+01 : f32
    %109 = arith.divf %108, %cst_35 : f32
    %c0_36 = arith.constant 0 : index
    %c0_37 = arith.constant 0 : index
    %110 = memref.load %arg7[%c0_36, %c0_37] : memref<1x1xf32, #tpu.memory_space<smem>>
    memref.store %109, %arg7[%c0_36, %c0_37] : memref<1x1xf32, #tpu.memory_space<smem>>
    return
  }
}

</mosaic_0001>

<llo_original>
// kernel: relation_net_forward.1
$region0: #{relation_net_forward.1}
  #allocation0 [shape = 'u32[]', space=smem, size = 0x4, offset = 0x4, fixed_abs, tag = 'smem constant byte address 0x4 - core index']
  #allocation1 [shape = 'u32[144,128]{1,0:T(1,128)}', space=vmem, size = 0x12000, scoped, tag = 'internal scratch']
  %s0 = inlined_call_operand.vmem [shape: f32[4,256], index: 0, kind: input, shape index: {}]
  %s1 = inlined_call_operand.vmem [shape: f32[12,256], index: 1, kind: input, shape index: {}]
  %s2 = inlined_call_operand.vmem [shape: bf16[512,256], index: 2, kind: input, shape index: {}]
  %s3 = inlined_call_operand.vmem [shape: f32[256,64], index: 3, kind: input, shape index: {}]
  %s4 = inlined_call_operand.hbm [shape: f32[72,256], index: 4, kind: input, shape index: {}]
  %s5 = inlined_call_operand.vmem [shape: f32[48,1], index: 5, kind: input, shape index: {}]
  %s6 = inlined_call_operand.vmem [shape: f32[48,1], index: 6, kind: output, shape index: {0}]
  %s7 = inlined_call_operand.hbm [shape: f32[1,1], index: 7, kind: output, shape index: {1}]
  %8 = xla_tuple %s6, %s7
  %s9 = sld [smem:[#allocation0]]
  $region46: #{relation_net_forward.1} parent=0
    _
  %s11 = ssub.s32 1, %s9
  %s12 = scalar_select 0, %s11, %s9
  $region1: #{relation_net_forward.1} parent=0
    #allocation2 [shape = 'u8[73728]{0}', space=vmem, size = 0x12000, scoped, tag = 'input window, operand 4, single buffered']
    #allocation3 [shape = 's32[1]{0}', space=sflag, size = 0x4, scoped, tag = 'scoped memory for relation_net_forward.1']
    #allocation4 [shape = 's32[1]{0}', space=sflag, size = 0x4, scoped, tag = 'scoped memory for relation_net_forward.1']
    #allocation5 [shape = 'u8[512]{0}', space=smem, size = 0x200, scoped, tag = 'output window, operand 1, single buffered']
    %13 = vsyncpa [#allocation3], 0
    %14 = vsyncpa [#allocation4], 0
    // Predicated region
    $region2: #{relation_net_forward.1} parent=1 // pred_check
      _
    $region3: #{relation_net_forward.1} parent=1 // pred_check_branch
      %16 = sbr.rel (0) target = $region5
    $region4: #{relation_net_forward.1} parent=1 // pred_region
      _
    $region5: #{relation_net_forward.1} parent=1 // pred_fallthru
      _
    // Predicated region
    $region6: #{relation_net_forward.1} parent=1 // pred_check
      _
    $region7: #{relation_net_forward.1} parent=1 // pred_check_branch
      %18 = sbr.rel (0) target = $region9
    $region8: #{relation_net_forward.1} parent=1 // pred_region
      _
    $region9: #{relation_net_forward.1} parent=1 // pred_fallthru
      _
    // Predicated region
    $region10: #{relation_net_forward.1} parent=1 // pred_check
      _
    $region11: #{relation_net_forward.1} parent=1 // pred_check_branch
      %20 = sbr.rel (0) target = $region13
    $region12: #{relation_net_forward.1} parent=1 // pred_region
      _
    $region13: #{relation_net_forward.1} parent=1 // pred_fallthru
      _
    // Predicated region
    $region14: #{relation_net_forward.1} parent=1 // pred_check
      _
    $region15: #{relation_net_forward.1} parent=1 // pred_check_branch
      %22 = sbr.rel (0) target = $region17
    $region16: #{relation_net_forward.1} parent=1 // pred_region
      _
    $region17: #{relation_net_forward.1} parent=1 // pred_fallthru
      _
    // Predicated region
    $region18: #{relation_net_forward.1} parent=1 // pred_check
      _
    $region19: #{relation_net_forward.1} parent=1 // pred_check_branch
      %24 = sbr.rel (0) target = $region21
    $region20: #{relation_net_forward.1} parent=1 // pred_region
      %s26 = ssub.s32 2304, 2304
      %27 = vsyncadd [#allocation3], %s26
      %s28 = sshll.u32 [#allocation2], 4
      %s29 = int_to_ptr.vmem [resolvable:$true] %s28
      %34 = dma.hbm_to_vmem [thread:$0]  %s4, 2304, %s29, [#allocation3], 256, 256, 16
    $region21: #{relation_net_forward.1} parent=1 // pred_fallthru
      _
    // Predicated region
    $region22: #{relation_net_forward.1} parent=1 // pred_check
      _
    $region23: #{relation_net_forward.1} parent=1 // pred_check_branch
      %36 = sbr.rel (0) target = $region25
    $region24: #{relation_net_forward.1} parent=1 // pred_region
      _
    $region25: #{relation_net_forward.1} parent=1 // pred_fallthru
      _
    // Predicated region
    $region26: #{relation_net_forward.1} parent=1 // pred_check
      _
    $region27: #{relation_net_forward.1} parent=1 // pred_check_branch
      %38 = sbr.rel (0) target = $region29
    $region28: #{relation_net_forward.1} parent=1 // pred_region
      %39 = dma.done [#allocation3], 2304
    $region29: #{relation_net_forward.1} parent=1 // pred_fallthru
      _
    %v40 = vld [vmem:[%s2] sm:$0xff]
    %v41 = vld [vmem:[%s2 + $0x8] sm:$0xff]
    %v42 = vld [vmem:[%s2 + $0x10] sm:$0xff]
    %v43 = vld [vmem:[%s2 + $0x18] sm:$0xff]
    %v44 = vld [vmem:[%s2 + $0x20] sm:$0xff]
    %v45 = vld [vmem:[%s2 + $0x28] sm:$0xff]
    %v46 = vld [vmem:[%s2 + $0x30] sm:$0xff]
    %v47 = vld [vmem:[%s2 + $0x38] sm:$0xff]
    %v48 = vld [vmem:[%s2 + $0x40] sm:$0xff]
    %v49 = vld [vmem:[%s2 + $0x48] sm:$0xff]
    %v50 = vld [vmem:[%s2 + $0x50] sm:$0xff]
    %v51 = vld [vmem:[%s2 + $0x58] sm:$0xff]
    %v52 = vld [vmem:[%s2 + $0x60] sm:$0xff]
    %v53 = vld [vmem:[%s2 + $0x68] sm:$0xff]
    %v54 = vld [vmem:[%s2 + $0x70] sm:$0xff]
    %v55 = vld [vmem:[%s2 + $0x78] sm:$0xff]
    %v56 = vld [vmem:[%s2 + $0x80] sm:$0xff]
    %v57 = vld [vmem:[%s2 + $0x88] sm:$0xff]
    %v58 = vld [vmem:[%s2 + $0x90] sm:$0xff]
    %v59 = vld [vmem:[%s2 + $0x98] sm:$0xff]
    %v60 = vld [vmem:[%s2 + $0xa0] sm:$0xff]
    %v61 = vld [vmem:[%s2 + $0xa8] sm:$0xff]
    %v62 = vld [vmem:[%s2 + $0xb0] sm:$0xff]
    %v63 = vld [vmem:[%s2 + $0xb8] sm:$0xff]
    %v64 = vld [vmem:[%s2 + $0xc0] sm:$0xff]
    %v65 = vld [vmem:[%s2 + $0xc8] sm:$0xff]
    %v66 = vld [vmem:[%s2 + $0xd0] sm:$0xff]
    %v67 = vld [vmem:[%s2 + $0xd8] sm:$0xff]
    %v68 = vld [vmem:[%s2 + $0xe0] sm:$0xff]
    %v69 = vld [vmem:[%s2 + $0xe8] sm:$0xff]
    %v70 = vld [vmem:[%s2 + $0xf0] sm:$0xff]
    %v71 = vld [vmem:[%s2 + $0xf8] sm:$0xff]
    %v72 = vld [vmem:[%s2 + $0x100] sm:$0xff]
    %v73 = vld [vmem:[%s2 + $0x108] sm:$0xff]
    %v74 = vld [vmem:[%s2 + $0x110] sm:$0xff]
    %v75 = vld [vmem:[%s2 + $0x118] sm:$0xff]
    %v76 = vld [vmem:[%s2 + $0x120] sm:$0xff]
    %v77 = vld [vmem:[%s2 + $0x128] sm:$0xff]
    %v78 = vld [vmem:[%s2 + $0x130] sm:$0xff]
    %v79 = vld [vmem:[%s2 + $0x138] sm:$0xff]
    %v80 = vld [vmem:[%s2 + $0x140] sm:$0xff]
    %v81 = vld [vmem:[%s2 + $0x148] sm:$0xff]
    %v82 = vld [vmem:[%s2 + $0x150] sm:$0xff]
    %v83 = vld [vmem:[%s2 + $0x158] sm:$0xff]
    %v84 = vld [vmem:[%s2 + $0x160] sm:$0xff]
    %v85 = vld [vmem:[%s2 + $0x168] sm:$0xff]
    %v86 = vld [vmem:[%s2 + $0x170] sm:$0xff]
    %v87 = vld [vmem:[%s2 + $0x178] sm:$0xff]
    %v88 = vld [vmem:[%s2 + $0x180] sm:$0xff]
    %v89 = vld [vmem:[%s2 + $0x188] sm:$0xff]
    %v90 = vld [vmem:[%s2 + $0x190] sm:$0xff]
    %v91 = vld [vmem:[%s2 + $0x198] sm:$0xff]
    %v92 = vld [vmem:[%s2 + $0x1a0] sm:$0xff]
    %v93 = vld [vmem:[%s2 + $0x1a8] sm:$0xff]
    %v94 = vld [vmem:[%s2 + $0x1b0] sm:$0xff]
    %v95 = vld [vmem:[%s2 + $0x1b8] sm:$0xff]
    %v96 = vld [vmem:[%s2 + $0x1c0] sm:$0xff]
    %v97 = vld [vmem:[%s2 + $0x1c8] sm:$0xff]
    %v98 = vld [vmem:[%s2 + $0x1d0] sm:$0xff]
    %v99 = vld [vmem:[%s2 + $0x1d8] sm:$0xff]
    %v100 = vld [vmem:[%s2 + $0x1e0] sm:$0xff]
    %v101 = vld [vmem:[%s2 + $0x1e8] sm:$0xff]
    %v102 = vld [vmem:[%s2 + $0x1f0] sm:$0xff]
    %v103 = vld [vmem:[%s2 + $0x1f8] sm:$0xff]
    %v104 = vld [vmem:[%s0] sm:$0xff]
    %v106 = vcombine.high %v104, %v104
    %v108 = vpack.c.bf16 %v104, %v104
    %v109 = vpack.c.bf16 %v106, %v106
    %v110 = vld [vmem:[%s1] sm:$0xff]
    %v111 = vld [vmem:[%s1 + $0x8] sm:$0xff]
    %v112 = vld [vmem:[%s1 + $0x10] sm:$0xf]
    %v113 = vld [vmem:[%s1 + $0x18] sm:$0xf]
    %v114 = vpack.c.bf16 %v112, %v110
    %v115 = vpack.c.bf16 %v113, %v111
    %v148 = vunpack.c.l.b16 %v72
    %v149 = vunpack.c.h.b16 %v72
    %v150 = vunpack.c.l.b16 %v73
    %v151 = vunpack.c.h.b16 %v73
    %v152 = vunpack.c.l.b16 %v74
    %v153 = vunpack.c.h.b16 %v74
    %v154 = vunpack.c.l.b16 %v75
    %v155 = vunpack.c.h.b16 %v75
    %v156 = vunpack.c.l.b16 %v76
    %v157 = vunpack.c.h.b16 %v76
    %v158 = vunpack.c.l.b16 %v77
    %v159 = vunpack.c.h.b16 %v77
    %v160 = vunpack.c.l.b16 %v78
    %v161 = vunpack.c.h.b16 %v78
    %v162 = vunpack.c.l.b16 %v79
    %v163 = vunpack.c.h.b16 %v79
    %v164 = vunpack.c.l.b16 %v80
    %v165 = vunpack.c.h.b16 %v80
    %v166 = vunpack.c.l.b16 %v81
    %v167 = vunpack.c.h.b16 %v81
    %v168 = vunpack.c.l.b16 %v82
    %v169 = vunpack.c.h.b16 %v82
    %v170 = vunpack.c.l.b16 %v83
    %v171 = vunpack.c.h.b16 %v83
    %v172 = vunpack.c.l.b16 %v84
    %v173 = vunpack.c.h.b16 %v84
    %v174 = vunpack.c.l.b16 %v85
    %v175 = vunpack.c.h.b16 %v85
    %v176 = vunpack.c.l.b16 %v86
    %v177 = vunpack.c.h.b16 %v86
    %v178 = vunpack.c.l.b16 %v87
    %v179 = vunpack.c.h.b16 %v87
    %v180 = vunpack.c.l.b16 %v88
    %v181 = vunpack.c.h.b16 %v88
    %v182 = vunpack.c.l.b16 %v89
    %v183 = vunpack.c.h.b16 %v89
    %v184 = vunpack.c.l.b16 %v90
    %v185 = vunpack.c.h.b16 %v90
    %v186 = vunpack.c.l.b16 %v91
    %v187 = vunpack.c.h.b16 %v91
    %v188 = vunpack.c.l.b16 %v92
    %v189 = vunpack.c.h.b16 %v92
    %v190 = vunpack.c.l.b16 %v93
    %v191 = vunpack.c.h.b16 %v93
    %v192 = vunpack.c.l.b16 %v94
    %v193 = vunpack.c.h.b16 %v94
    %v194 = vunpack.c.l.b16 %v95
    %v195 = vunpack.c.h.b16 %v95
    %v196 = vunpack.c.l.b16 %v96
    %v197 = vunpack.c.h.b16 %v96
    %v198 = vunpack.c.l.b16 %v97
    %v199 = vunpack.c.h.b16 %v97
    %v200 = vunpack.c.l.b16 %v98
    %v201 = vunpack.c.h.b16 %v98
    %v202 = vunpack.c.l.b16 %v99
    %v203 = vunpack.c.h.b16 %v99
    %v204 = vunpack.c.l.b16 %v100
    %v205 = vunpack.c.h.b16 %v100
    %v206 = vunpack.c.l.b16 %v101
    %v207 = vunpack.c.h.b16 %v101
    %v208 = vunpack.c.l.b16 %v102
    %v209 = vunpack.c.h.b16 %v102
    %v210 = vunpack.c.l.b16 %v103
    %v211 = vunpack.c.h.b16 %v103
    %v212 = vpack.c.b16 %v150, %v148
    %v213 = vpack.c.b16 %v151, %v149
    %v214 = vpack.c.b16 %v154, %v152
    %v215 = vpack.c.b16 %v155, %v153
    %v216 = vpack.c.b16 %v158, %v156
    %v217 = vpack.c.b16 %v159, %v157
    %v218 = vpack.c.b16 %v162, %v160
    %v219 = vpack.c.b16 %v163, %v161
    %v220 = vpack.c.b16 %v166, %v164
    %v221 = vpack.c.b16 %v167, %v165
    %v222 = vpack.c.b16 %v170, %v168
    %v223 = vpack.c.b16 %v171, %v169
    %v224 = vpack.c.b16 %v174, %v172
    %v225 = vpack.c.b16 %v175, %v173
    %v226 = vpack.c.b16 %v178, %v176
    %v227 = vpack.c.b16 %v179, %v177
    %v228 = vpack.c.b16 %v182, %v180
    %v229 = vpack.c.b16 %v183, %v181
    %v230 = vpack.c.b16 %v186, %v184
    %v231 = vpack.c.b16 %v187, %v185
    %v232 = vpack.c.b16 %v190, %v188
    %v233 = vpack.c.b16 %v191, %v189
    %v234 = vpack.c.b16 %v194, %v192
    %v235 = vpack.c.b16 %v195, %v193
    %v236 = vpack.c.b16 %v198, %v196
    %v237 = vpack.c.b16 %v199, %v197
    %v238 = vpack.c.b16 %v202, %v200
    %v239 = vpack.c.b16 %v203, %v201
    %v240 = vpack.c.b16 %v206, %v204
    %v241 = vpack.c.b16 %v207, %v205
    %v242 = vpack.c.b16 %v210, %v208
    %v243 = vpack.c.b16 %v211, %v209
    %276 = vmatprep.subr.bf16.mxu0 %v213
    %277 = vmatpush1.bf16.msra.mxu0 %v212
    %278 = vmatprep.subr.bf16.mxu0 %v215
    %279 = vmatpush1.bf16.msra.mxu0 %v214
    %280 = vmatprep.subr.bf16.mxu0 %v217
    %281 = vmatpush1.bf16.msra.mxu0 %v216
    %282 = vmatprep.subr.bf16.mxu0 %v219
    %283 = vmatpush1.bf16.msra.mxu0 %v218
    %284 = vmatprep.subr.bf16.mxu0 %v221
    %285 = vmatpush1.bf16.msra.mxu0 %v220
    %286 = vmatprep.subr.bf16.mxu0 %v223
    %287 = vmatpush1.bf16.msra.mxu0 %v222
    %288 = vmatprep.subr.bf16.mxu0 %v225
    %289 = vmatpush1.bf16.msra.mxu0 %v224
    %290 = vmatprep.subr.bf16.mxu0 %v227
    %291 = vmatpush1.bf16.msra.mxu0 %v226
    %292 = vmatprep.subr.bf16.mxu0 %v229
    %293 = vmatpush1.bf16.msra.mxu0 %v228
    %294 = vmatprep.subr.bf16.mxu0 %v231
    %295 = vmatpush1.bf16.msra.mxu0 %v230
    %296 = vmatprep.subr.bf16.mxu0 %v233
    %297 = vmatpush1.bf16.msra.mxu0 %v232
    %298 = vmatprep.subr.bf16.mxu0 %v235
    %299 = vmatpush1.bf16.msra.mxu0 %v234
    %300 = vmatprep.subr.bf16.mxu0 %v237
    %301 = vmatpush1.bf16.msra.mxu0 %v236
    %302 = vmatprep.subr.bf16.mxu0 %v239
    %303 = vmatpush1.bf16.msra.mxu0 %v238
    %304 = vmatprep.subr.bf16.mxu0 %v241
    %305 = vmatpush1.bf16.msra.mxu0 %v240
    %306 = vmatprep.subr.bf16.mxu0 %v243
    %307 = vmatpush1.bf16.msra.mxu0 %v242
    %308 = vmatprep.mubr.bf16.mxu0 %v115
    %309 = vmatmul.mubr.bf16.gmra.mrb[0].mxu0 %v114
    %v310 = vpop.f32.mrb[0].mxu0
    %v311 = vadd.f32 0.0, %v310
    %v312 = vpop.f32.mrb[0].mxu0
    %v313 = vadd.f32 0.0, %v312
    %v314 = vpop.f32.mrb[0].mxu0
    %v315 = vadd.f32 0.0, %v314
    %v316 = vpop.f32.mrb[0].mxu0
    %v317 = vadd.f32 0.0, %v316
    %318 = vdwg.mxu0
    %v319 = vld [vmem:[#allocation2] ss:$8 sm:$0x3]
    %s320 = scalar_lea.vmem [#allocation2], 1
    %v321 = vld [vmem:[%s320] ss:$8 sm:$0x3]
    %s322 = scalar_lea.vmem [#allocation2], 2
    %v323 = vld [vmem:[%s322] ss:$8 sm:$0x3]
    %v325 = vlaneseq
    %v326 = vshrl.u32 %v325, 7
    %v327 = vsub.s32 0, %v326
    %v328 = vrot.slane %v319, %v327
    %v329 = vlaneseq
    %v330 = vshrl.u32 %v329, 7
    %v331 = vsub.s32 1, %v330
    %v332 = vrot.slane %v319, %v331
    %v367 = vunpack.c.l.b16 %v40
    %v368 = vunpack.c.h.b16 %v40
    %v369 = vunpack.c.l.b16 %v41
    %v370 = vunpack.c.h.b16 %v41
    %v371 = vunpack.c.l.b16 %v42
    %v372 = vunpack.c.h.b16 %v42
    %v373 = vunpack.c.l.b16 %v43
    %v374 = vunpack.c.h.b16 %v43
    %v375 = vunpack.c.l.b16 %v44
    %v376 = vunpack.c.h.b16 %v44
    %v377 = vunpack.c.l.b16 %v45
    %v378 = vunpack.c.h.b16 %v45
    %v379 = vunpack.c.l.b16 %v46
    %v380 = vunpack.c.h.b16 %v46
    %v381 = vunpack.c.l.b16 %v47
    %v382 = vunpack.c.h.b16 %v47
    %v383 = vunpack.c.l.b16 %v48
    %v384 = vunpack.c.h.b16 %v48
    %v385 = vunpack.c.l.b16 %v49
    %v386 = vunpack.c.h.b16 %v49
    %v387 = vunpack.c.l.b16 %v50
    %v388 = vunpack.c.h.b16 %v50
    %v389 = vunpack.c.l.b16 %v51
    %v390 = vunpack.c.h.b16 %v51
    %v391 = vunpack.c.l.b16 %v52
    %v392 = vunpack.c.h.b16 %v52
    %v393 = vunpack.c.l.b16 %v53
    %v394 = vunpack.c.h.b16 %v53
    %v395 = vunpack.c.l.b16 %v54
    %v396 = vunpack.c.h.b16 %v54
    %v397 = vunpack.c.l.b16 %v55
    %v398 = vunpack.c.h.b16 %v55
    %v399 = vunpack.c.l.b16 %v56
    %v400 = vunpack.c.h.b16 %v56
    %v401 = vunpack.c.l.b16 %v57
    %v402 = vunpack.c.h.b16 %v57
    %v403 = vunpack.c.l.b16 %v58
    %v404 = vunpack.c.h.b16 %v58
    %v405 = vunpack.c.l.b16 %v59
    %v406 = vunpack.c.h.b16 %v59
    %v407 = vunpack.c.l.b16 %v60
    %v408 = vunpack.c.h.b16 %v60
    %v409 = vunpack.c.l.b16 %v61
    %v410 = vunpack.c.h.b16 %v61
    %v411 = vunpack.c.l.b16 %v62
    %v412 = vunpack.c.h.b16 %v62
    %v413 = vunpack.c.l.b16 %v63
    %v414 = vunpack.c.h.b16 %v63
    %v415 = vunpack.c.l.b16 %v64
    %v416 = vunpack.c.h.b16 %v64
    %v417 = vunpack.c.l.b16 %v65
    %v418 = vunpack.c.h.b16 %v65
    %v419 = vunpack.c.l.b16 %v66
    %v420 = vunpack.c.h.b16 %v66
    %v421 = vunpack.c.l.b16 %v67
    %v422 = vunpack.c.h.b16 %v67
    %v423 = vunpack.c.l.b16 %v68
    %v424 = vunpack.c.h.b16 %v68
    %v425 = vunpack.c.l.b16 %v69
    %v426 = vunpack.c.h.b16 %v69
    %v427 = vunpack.c.l.b16 %v70
    %v428 = vunpack.c.h.b16 %v70
    %v429 = vunpack.c.l.b16 %v71
    %v430 = vunpack.c.h.b16 %v71
    %v431 = vpack.c.b16 %v369, %v367
    %v432 = vpack.c.b16 %v370, %v368
    %v433 = vpack.c.b16 %v373, %v371
    %v434 = vpack.c.b16 %v374, %v372
    %v435 = vpack.c.b16 %v377, %v375
    %v436 = vpack.c.b16 %v378, %v376
    %v437 = vpack.c.b16 %v381, %v379
    %v438 = vpack.c.b16 %v382, %v380
    %v439 = vpack.c.b16 %v385, %v383
    %v440 = vpack.c.b16 %v386, %v384
    %v441 = vpack.c.b16 %v389, %v387
    %v442 = vpack.c.b16 %v390, %v388
    %v443 = vpack.c.b16 %v393, %v391
    %v444 = vpack.c.b16 %v394, %v392
    %v445 = vpack.c.b16 %v397, %v395
    %v446 = vpack.c.b16 %v398, %v396
    %v447 = vpack.c.b16 %v401, %v399
    %v448 = vpack.c.b16 %v402, %v400
    %v449 = vpack.c.b16 %v405, %v403
    %v450 = vpack.c.b16 %v406, %v404
    %v451 = vpack.c.b16 %v409, %v407
    %v452 = vpack.c.b16 %v410, %v408
    %v453 = vpack.c.b16 %v413, %v411
    %v454 = vpack.c.b16 %v414, %v412
    %v455 = vpack.c.b16 %v417, %v415
    %v456 = vpack.c.b16 %v418, %v416
    %v457 = vpack.c.b16 %v421, %v419
    %v458 = vpack.c.b16 %v422, %v420
    %v459 = vpack.c.b16 %v425, %v423
    %v460 = vpack.c.b16 %v426, %v424
    %v461 = vpack.c.b16 %v429, %v427
    %v462 = vpack.c.b16 %v430, %v428
    %495 = vmatprep.subr.bf16.mxu0 %v432
    %496 = vmatpush1.bf16.msra.mxu0 %v431
    %497 = vmatprep.subr.bf16.mxu0 %v434
    %498 = vmatpush1.bf16.msra.mxu0 %v433
    %499 = vmatprep.subr.bf16.mxu0 %v436
    %500 = vmatpush1.bf16.msra.mxu0 %v435
    %501 = vmatprep.subr.bf16.mxu0 %v438
    %502 = vmatpush1.bf16.msra.mxu0 %v437
    %503 = vmatprep.subr.bf16.mxu0 %v440
    %504 = vmatpush1.bf16.msra.mxu0 %v439
    %505 = vmatprep.subr.bf16.mxu0 %v442
    %506 = vmatpush1.bf16.msra.mxu0 %v441
    %507 = vmatprep.subr.bf16.mxu0 %v444
    %508 = vmatpush1.bf16.msra.mxu0 %v443
    %509 = vmatprep.subr.bf16.mxu0 %v446
    %510 = vmatpush1.bf16.msra.mxu0 %v445
    %511 = vmatprep.subr.bf16.mxu0 %v448
    %512 = vmatpush1.bf16.msra.mxu0 %v447
    %513 = vmatprep.subr.bf16.mxu0 %v450
    %514 = vmatpush1.bf16.msra.mxu0 %v449
    %515 = vmatprep.subr.bf16.mxu0 %v452
    %516 = vmatpush1.bf16.msra.mxu0 %v451
    %517 = vmatprep.subr.bf16.mxu0 %v454
    %518 = vmatpush1.bf16.msra.mxu0 %v453
    %519 = vmatprep.subr.bf16.mxu0 %v456
    %520 = vmatpush1.bf16.msra.mxu0 %v455
    %521 = vmatprep.subr.bf16.mxu0 %v458
    %522 = vmatpush1.bf16.msra.mxu0 %v457
    %523 = vmatprep.subr.bf16.mxu0 %v460
    %524 = vmatpush1.bf16.msra.mxu0 %v459
    %525 = vmatprep.subr.bf16.mxu0 %v462
    %526 = vmatpush1.bf16.msra.mxu0 %v461
    %527 = vmatprep.mubr.bf16.mxu0 %v109
    %528 = vmatmul.mubr.bf16.gmra.mrb[0].mxu0 %v108
    %v529 = vpop.f32.mrb[0].mxu0
    %v530 = vadd.f32 %v328, %v529
    %v531 = vpop.f32.mrb[0].mxu0
    %v532 = vadd.f32 %v332, %v531
    %v533 = vpop.f32.mrb[0].mxu0
    %v534 = vpop.f32.mrb[0].mxu0
    %535 = vdwg.mxu0
    %v536 = vlaneseq
    %v537 = vshrl.u32 %v536, 7
    %v538 = vsub.s32 0, %v537
    %v539 = vrot.slane %v311, %v538
    %v540 = vlaneseq
    %v541 = vshrl.u32 %v540, 7
    %v542 = vsub.s32 0, %v541
    %v543 = vrot.slane %v313, %v542
    %v544 = vadd.f32 %v530, %v539
    %v545 = vadd.f32 %v532, %v543
    %v546 = vlaneseq
    %v547 = vshrl.u32 %v546, 7
    %v548 = vsub.s32 1, %v547
    %v549 = vrot.slane %v311, %v548
    %v550 = vlaneseq
    %v551 = vshrl.u32 %v550, 7
    %v552 = vsub.s32 1, %v551
    %v553 = vrot.slane %v313, %v552
    %v554 = vadd.f32 %v530, %v549
    %v555 = vadd.f32 %v532, %v553
    %v556 = vlaneseq
    %v557 = vshrl.u32 %v556, 7
    %v558 = vsub.s32 2, %v557
    %v559 = vrot.slane %v311, %v558
    %v560 = vlaneseq
    %v561 = vshrl.u32 %v560, 7
    %v562 = vsub.s32 2, %v561
    %v563 = vrot.slane %v313, %v562
    %v564 = vadd.f32 %v530, %v559
    %v565 = vadd.f32 %v532, %v563
    %v566 = vlaneseq
    %v567 = vshrl.u32 %v566, 7
    %v568 = vsub.s32 3, %v567
    %v569 = vrot.slane %v311, %v568
    %v570 = vlaneseq
    %v571 = vshrl.u32 %v570, 7
    %v572 = vsub.s32 3, %v571
    %v573 = vrot.slane %v313, %v572
    %v574 = vadd.f32 %v530, %v569
    %v575 = vadd.f32 %v532, %v573
    %v576 = vlaneseq
    %v577 = vshrl.u32 %v576, 7
    %v578 = vsub.s32 4, %v577
    %v579 = vrot.slane %v311, %v578
    %v580 = vlaneseq
    %v581 = vshrl.u32 %v580, 7
    %v582 = vsub.s32 4, %v581
    %v583 = vrot.slane %v313, %v582
    %v584 = vadd.f32 %v530, %v579
    %v585 = vadd.f32 %v532, %v583
    %v586 = vlaneseq
    %v587 = vshrl.u32 %v586, 7
    %v588 = vsub.s32 5, %v587
    %v589 = vrot.slane %v311, %v588
    %v590 = vlaneseq
    %v591 = vshrl.u32 %v590, 7
    %v592 = vsub.s32 5, %v591
    %v593 = vrot.slane %v313, %v592
    %v594 = vadd.f32 %v530, %v589
    %v595 = vadd.f32 %v532, %v593
    %v596 = vlaneseq
    %v597 = vshrl.u32 %v596, 7
    %v598 = vsub.s32 6, %v597
    %v599 = vrot.slane %v311, %v598
    %v600 = vlaneseq
    %v601 = vshrl.u32 %v600, 7
    %v602 = vsub.s32 6, %v601
    %v603 = vrot.slane %v313, %v602
    %v604 = vadd.f32 %v530, %v599
    %v605 = vadd.f32 %v532, %v603
    %v606 = vlaneseq
    %v607 = vshrl.u32 %v606, 7
    %v608 = vsub.s32 7, %v607
    %v609 = vrot.slane %v311, %v608
    %v610 = vlaneseq
    %v611 = vshrl.u32 %v610, 7
    %v612 = vsub.s32 7, %v611
    %v613 = vrot.slane %v313, %v612
    %v614 = vadd.f32 %v530, %v609
    %v615 = vadd.f32 %v532, %v613
    %v616 = vlaneseq
    %v617 = vshrl.u32 %v616, 7
    %v618 = vsub.s32 0, %v617
    %v619 = vrot.slane %v315, %v618
    %v620 = vlaneseq
    %v621 = vshrl.u32 %v620, 7
    %v622 = vsub.s32 0, %v621
    %v623 = vrot.slane %v317, %v622
    %v624 = vadd.f32 %v530, %v619
    %v625 = vadd.f32 %v532, %v623
    %v626 = vlaneseq
    %v627 = vshrl.u32 %v626, 7
    %v628 = vsub.s32 1, %v627
    %v629 = vrot.slane %v315, %v628
    %v630 = vlaneseq
    %v631 = vshrl.u32 %v630, 7
    %v632 = vsub.s32 1, %v631
    %v633 = vrot.slane %v317, %v632
    %v634 = vadd.f32 %v530, %v629
    %v635 = vadd.f32 %v532, %v633
    %v636 = vlaneseq
    %v637 = vshrl.u32 %v636, 7
    %v638 = vsub.s32 2, %v637
    %v639 = vrot.slane %v315, %v638
    %v640 = vlaneseq
    %v641 = vshrl.u32 %v640, 7
    %v642 = vsub.s32 2, %v641
    %v643 = vrot.slane %v317, %v642
    %v644 = vadd.f32 %v530, %v639
    %v645 = vadd.f32 %v532, %v643
    %v646 = vlaneseq
    %v647 = vshrl.u32 %v646, 7
    %v648 = vsub.s32 3, %v647
    %v649 = vrot.slane %v315, %v648
    %v650 = vlaneseq
    %v651 = vshrl.u32 %v650, 7
    %v652 = vsub.s32 3, %v651
    %v653 = vrot.slane %v317, %v652
    %v654 = vadd.f32 %v530, %v649
    %v655 = vadd.f32 %v532, %v653
    %v658 = vrot.slane %v554, 4
    %v659 = vrot.slane %v555, 4
    %v664 = vrot.slane %v574, 4
    %v665 = vrot.slane %v575, 4
    %v670 = vrot.slane %v594, 4
    %v671 = vrot.slane %v595, 4
    %v676 = vrot.slane %v614, 4
    %v677 = vrot.slane %v615, 4
    %v682 = vrot.slane %v634, 4
    %v683 = vrot.slane %v635, 4
    %v688 = vrot.slane %v654, 4
    %v689 = vrot.slane %v655, 4
    %vm692 = vcmask 1043456
    %v693 = vsel %vm692, %v544, %v658
    %v694 = vsel %vm692, %v545, %v659
    %v695 = vsel %vm692, %v564, %v664
    %v696 = vsel %vm692, %v565, %v665
    %v697 = vsel %vm692, %v584, %v670
    %v698 = vsel %vm692, %v585, %v671
    %v699 = vsel %vm692, %v604, %v676
    %v700 = vsel %vm692, %v605, %v677
    %v701 = vsel %vm692, %v624, %v682
    %v702 = vsel %vm692, %v625, %v683
    %v703 = vsel %vm692, %v644, %v688
    %v704 = vsel %vm692, %v645, %v689
    %v705 = vadd.f32 %v693, %v695
    %v706 = vadd.f32 %v705, %v697
    %v707 = vadd.f32 %v706, %v699
    %v708 = vadd.f32 %v707, %v701
    %v709 = vadd.f32 %v708, %v703
    %v710 = vrot.slane %v709, 4
    %v711 = vadd.f32 %v709, %v710
    %v712 = vrot.slane %v711, 2
    %v713 = vadd.f32 %v711, %v712
    %v714 = vrot.slane %v713, 1
    %v715 = vadd.f32 %v713, %v714
    %v716 = vadd.f32 %v694, %v696
    %v717 = vadd.f32 %v716, %v698
    %v718 = vadd.f32 %v717, %v700
    %v719 = vadd.f32 %v718, %v702
    %v720 = vadd.f32 %v719, %v704
    %v721 = vrot.slane %v720, 4
    %v722 = vadd.f32 %v720, %v721
    %v723 = vrot.slane %v722, 2
    %v724 = vadd.f32 %v722, %v723
    %v725 = vrot.slane %v724, 1
    %v726 = vadd.f32 %v724, %v725
    %v727 = vmul.f32 %v715, 0.020833334
    %v728 = vmul.f32 %v726, 0.020833334
    %v729 = vmul.f32 %v693, %v693
    %v730 = vmul.f32 %v694, %v694
    %v731 = vmul.f32 %v695, %v695
    %v732 = vmul.f32 %v696, %v696
    %v733 = vmul.f32 %v697, %v697
    %v734 = vmul.f32 %v698, %v698
    %v735 = vmul.f32 %v699, %v699
    %v736 = vmul.f32 %v700, %v700
    %v737 = vmul.f32 %v701, %v701
    %v738 = vmul.f32 %v702, %v702
    %v739 = vmul.f32 %v703, %v703
    %v740 = vmul.f32 %v704, %v704
    %v741 = vadd.f32 %v729, %v731
    %v742 = vadd.f32 %v741, %v733
    %v743 = vadd.f32 %v742, %v735
    %v744 = vadd.f32 %v743, %v737
    %v745 = vadd.f32 %v744, %v739
    %v746 = vrot.slane %v745, 4
    %v747 = vadd.f32 %v745, %v746
    %v748 = vrot.slane %v747, 2
    %v749 = vadd.f32 %v747, %v748
    %v750 = vrot.slane %v749, 1
    %v751 = vadd.f32 %v749, %v750
    %v752 = vadd.f32 %v730, %v732
    %v753 = vadd.f32 %v752, %v734
    %v754 = vadd.f32 %v753, %v736
    %v755 = vadd.f32 %v754, %v738
    %v756 = vadd.f32 %v755, %v740
    %v757 = vrot.slane %v756, 4
    %v758 = vadd.f32 %v756, %v757
    %v759 = vrot.slane %v758, 2
    %v760 = vadd.f32 %v758, %v759
    %v761 = vrot.slane %v760, 1
    %v762 = vadd.f32 %v760, %v761
    %v763 = vmul.f32 %v751, 0.020833334
    %v764 = vmul.f32 %v762, 0.020833334
    %v765 = vmul.f32 %v727, %v727
    %v766 = vmul.f32 %v728, %v728
    %v767 = vsub.f32 %v763, %v765
    %v768 = vsub.f32 %v764, %v766
    %v769 = vsub.f32 %v693, %v727
    %v770 = vsub.f32 %v694, %v728
    %v771 = vsub.f32 %v695, %v727
    %v772 = vsub.f32 %v696, %v728
    %v773 = vsub.f32 %v697, %v727
    %v774 = vsub.f32 %v698, %v728
    %v775 = vsub.f32 %v699, %v727
    %v776 = vsub.f32 %v700, %v728
    %v777 = vsub.f32 %v701, %v727
    %v778 = vsub.f32 %v702, %v728
    %v779 = vsub.f32 %v703, %v727
    %v780 = vsub.f32 %v704, %v728
    %v782 = vlaneseq
    %v783 = vshrl.u32 %v782, 7
    %v784 = vsub.s32 0, %v783
    %v785 = vrot.slane %v321, %v784
    %v786 = vlaneseq
    %v787 = vshrl.u32 %v786, 7
    %v788 = vsub.s32 1, %v787
    %v789 = vrot.slane %v321, %v788
    %v792 = vmul.f32 %v785, %v769
    %v793 = vmul.f32 %v789, %v770
    %v794 = vmul.f32 %v785, %v771
    %v795 = vmul.f32 %v789, %v772
    %v796 = vmul.f32 %v785, %v773
    %v797 = vmul.f32 %v789, %v774
    %v798 = vmul.f32 %v785, %v775
    %v799 = vmul.f32 %v789, %v776
    %v800 = vmul.f32 %v785, %v777
    %v801 = vmul.f32 %v789, %v778
    %v802 = vmul.f32 %v785, %v779
    %v803 = vmul.f32 %v789, %v780
    %v804 = vadd.f32 %v767, 1e-05
    %v805 = vadd.f32 %v768, 1e-05
    %v806 = vrsqrt.pop %v804
    %v807 = vrsqrt.pop %v805
    %v808 = vmul.f32 %v792, %v806
    %v809 = vmul.f32 %v793, %v807
    %v810 = vmul.f32 %v794, %v806
    %v811 = vmul.f32 %v795, %v807
    %v812 = vmul.f32 %v796, %v806
    %v813 = vmul.f32 %v797, %v807
    %v814 = vmul.f32 %v798, %v806
    %v815 = vmul.f32 %v799, %v807
    %v816 = vmul.f32 %v800, %v806
    %v817 = vmul.f32 %v801, %v807
    %v818 = vmul.f32 %v802, %v806
    %v819 = vmul.f32 %v803, %v807
    %v821 = vlaneseq
    %v822 = vshrl.u32 %v821, 7
    %v823 = vsub.s32 0, %v822
    %v824 = vrot.slane %v323, %v823
    %v825 = vlaneseq
    %v826 = vshrl.u32 %v825, 7
    %v827 = vsub.s32 1, %v826
    %v828 = vrot.slane %v323, %v827
    %v831 = vadd.f32 %v808, %v824
    %v832 = vadd.f32 %v809, %v828
    %v833 = vadd.f32 %v810, %v824
    %v834 = vadd.f32 %v811, %v828
    %v835 = vadd.f32 %v812, %v824
    %v836 = vadd.f32 %v813, %v828
    %v837 = vadd.f32 %v814, %v824
    %v838 = vadd.f32 %v815, %v828
    %v839 = vadd.f32 %v816, %v824
    %v840 = vadd.f32 %v817, %v828
    %v841 = vadd.f32 %v818, %v824
    %v842 = vadd.f32 %v819, %v828
    %v843 = vmax.f32 %v831, 0.0
    %v844 = vmax.f32 %v832, 0.0
    %v845 = vmax.f32 %v833, 0.0
    %v846 = vmax.f32 %v834, 0.0
    %v847 = vmax.f32 %v835, 0.0
    %v848 = vmax.f32 %v836, 0.0
    %v849 = vmax.f32 %v837, 0.0
    %v850 = vmax.f32 %v838, 0.0
    %v851 = vmax.f32 %v839, 0.0
    %v852 = vmax.f32 %v840, 0.0
    %v853 = vmax.f32 %v841, 0.0
    %v854 = vmax.f32 %v842, 0.0
    %v855 = vld [vmem:[#allocation2 + $0x3] ss:$0 sm:$0xff]
    %v856 = vld [vmem:[%s3] sm:$0xff]
    %v857 = vld [vmem:[%s3 + $0x8] sm:$0xff]
    %v858 = vld [vmem:[%s3 + $0x10] sm:$0xff]
    %v859 = vld [vmem:[%s3 + $0x18] sm:$0xff]
    %v860 = vld [vmem:[%s3 + $0x20] sm:$0xff]
    %v861 = vld [vmem:[%s3 + $0x28] sm:$0xff]
    %v862 = vld [vmem:[%s3 + $0x30] sm:$0xff]
    %v863 = vld [vmem:[%s3 + $0x38] sm:$0xff]
    %v864 = vld [vmem:[%s3 + $0x40] sm:$0xff]
    %v865 = vld [vmem:[%s3 + $0x48] sm:$0xff]
    %v866 = vld [vmem:[%s3 + $0x50] sm:$0xff]
    %v867 = vld [vmem:[%s3 + $0x58] sm:$0xff]
    %v868 = vld [vmem:[%s3 + $0x60] sm:$0xff]
    %v869 = vld [vmem:[%s3 + $0x68] sm:$0xff]
    %v870 = vld [vmem:[%s3 + $0x70] sm:$0xff]
    %v871 = vld [vmem:[%s3 + $0x78] sm:$0xff]
    %v872 = vld [vmem:[%s3 + $0x80] sm:$0xff]
    %v873 = vld [vmem:[%s3 + $0x88] sm:$0xff]
    %v874 = vld [vmem:[%s3 + $0x90] sm:$0xff]
    %v875 = vld [vmem:[%s3 + $0x98] sm:$0xff]
    %v876 = vld [vmem:[%s3 + $0xa0] sm:$0xff]
    %v877 = vld [vmem:[%s3 + $0xa8] sm:$0xff]
    %v878 = vld [vmem:[%s3 + $0xb0] sm:$0xff]
    %v879 = vld [vmem:[%s3 + $0xb8] sm:$0xff]
    %v880 = vld [vmem:[%s3 + $0xc0] sm:$0xff]
    %v881 = vld [vmem:[%s3 + $0xc8] sm:$0xff]
    %v882 = vld [vmem:[%s3 + $0xd0] sm:$0xff]
    %v883 = vld [vmem:[%s3 + $0xd8] sm:$0xff]
    %v884 = vld [vmem:[%s3 + $0xe0] sm:$0xff]
    %v885 = vld [vmem:[%s3 + $0xe8] sm:$0xff]
    %v886 = vld [vmem:[%s3 + $0xf0] sm:$0xff]
    %v887 = vld [vmem:[%s3 + $0xf8] sm:$0xff]
    %888 = vmatprep.subr.mxu0 0.0
    %889 = vmatpush1.msra.mxu0 %v856
    %890 = vmatprep.subr.mxu0 0.0
    %891 = vmatpush1.msra.mxu0 %v857
    %892 = vmatprep.subr.mxu0 0.0
    %893 = vmatpush1.msra.mxu0 %v858
    %894 = vmatprep.subr.mxu0 0.0
    %895 = vmatpush1.msra.mxu0 %v859
    %896 = vmatprep.subr.mxu0 0.0
    %897 = vmatpush1.msra.mxu0 %v860
    %898 = vmatprep.subr.mxu0 0.0
    %899 = vmatpush1.msra.mxu0 %v861
    %900 = vmatprep.subr.mxu0 0.0
    %901 = vmatpush1.msra.mxu0 %v862
    %902 = vmatprep.subr.mxu0 0.0
    %903 = vmatpush1.msra.mxu0 %v863
    %904 = vmatprep.subr.mxu0 0.0
    %905 = vmatpush1.msra.mxu0 %v864
    %906 = vmatprep.subr.mxu0 0.0
    %907 = vmatpush1.msra.mxu0 %v865
    %908 = vmatprep.subr.mxu0 0.0
    %909 = vmatpush1.msra.mxu0 %v866
    %910 = vmatprep.subr.mxu0 0.0
    %911 = vmatpush1.msra.mxu0 %v867
    %912 = vmatprep.subr.mxu0 0.0
    %913 = vmatpush1.msra.mxu0 %v868
    %914 = vmatprep.subr.mxu0 0.0
    %915 = vmatpush1.msra.mxu0 %v869
    %916 = vmatprep.subr.mxu0 0.0
    %917 = vmatpush1.msra.mxu0 %v870
    %918 = vmatprep.subr.mxu0 0.0
    %919 = vmatpush1.msra.mxu0 %v871
    %920 = vmatprep.subr.mxu0 0.0
    %921 = vmatpush1.msra.mxu0 %v872
    %922 = vmatprep.subr.mxu0 0.0
    %923 = vmatpush1.msra.mxu0 %v873
    %924 = vmatprep.subr.mxu0 0.0
    %925 = vmatpush1.msra.mxu0 %v874
    %926 = vmatprep.subr.mxu0 0.0
    %927 = vmatpush1.msra.mxu0 %v875
    %928 = vmatprep.subr.mxu0 0.0
    %929 = vmatpush1.msra.mxu0 %v876
    %930 = vmatprep.subr.mxu0 0.0
    %931 = vmatpush1.msra.mxu0 %v877
    %932 = vmatprep.subr.mxu0 0.0
    %933 = vmatpush1.msra.mxu0 %v878
    %934 = vmatprep.subr.mxu0 0.0
    %935 = vmatpush1.msra.mxu0 %v879
    %936 = vmatprep.subr.mxu0 0.0
    %937 = vmatpush1.msra.mxu0 %v880
    %938 = vmatprep.subr.mxu0 0.0
    %939 = vmatpush1.msra.mxu0 %v881
    %940 = vmatprep.subr.mxu0 0.0
    %941 = vmatpush1.msra.mxu0 %v882
    %942 = vmatprep.subr.mxu0 0.0
    %943 = vmatpush1.msra.mxu0 %v883
    %944 = vmatprep.subr.mxu0 0.0
    %945 = vmatpush1.msra.mxu0 %v884
    %946 = vmatprep.subr.mxu0 0.0
    %947 = vmatpush1.msra.mxu0 %v885
    %948 = vmatprep.subr.mxu0 0.0
    %949 = vmatpush1.msra.mxu0 %v886
    %950 = vmatprep.subr.mxu0 0.0
    %951 = vmatpush1.msra.mxu0 %v887
    %952 = vmatprep.mubr.f32.mxu0 %v844
    %953 = vmatmul.mubr.f32.gmra.mrb[0].mxu0 %v843
    %v954 = vpop.f32.mrb[0].mxu0
    %v955 = vadd.f32 %v855, %v954
    %v956 = vpop.f32.mrb[0].mxu0
    %957 = vmatprep.mubr.f32.mxu0 %v846
    %958 = vmatmul.mubr.f32.gmra.mrb[0].mxu0 %v845
    %v959 = vpop.f32.mrb[0].mxu0
    %v960 = vadd.f32 %v855, %v959
    %v961 = vpop.f32.mrb[0].mxu0
    %962 = vmatprep.mubr.f32.mxu0 %v848
    %963 = vmatmul.mubr.f32.gmra.mrb[0].mxu0 %v847
    %v964 = vpop.f32.mrb[0].mxu0
    %v965 = vadd.f32 %v855, %v964
    %v966 = vpop.f32.mrb[0].mxu0
    %967 = vmatprep.mubr.f32.mxu0 %v850
    %968 = vmatmul.mubr.f32.gmra.mrb[0].mxu0 %v849
    %v969 = vpop.f32.mrb[0].mxu0
    %v970 = vadd.f32 %v855, %v969
    %v971 = vpop.f32.mrb[0].mxu0
    %972 = vmatprep.mubr.f32.mxu0 %v852
    %973 = vmatmul.mubr.f32.gmra.mrb[0].mxu0 %v851
    %v974 = vpop.f32.mrb[0].mxu0
    %v975 = vadd.f32 %v855, %v974
    %v976 = vpop.f32.mrb[0].mxu0
    %977 = vmatprep.mubr.f32.mxu0 %v854
    %978 = vmatmul.mubr.f32.gmra.mrb[0].mxu0 %v853
    %v979 = vpop.f32.mrb[0].mxu0
    %v980 = vadd.f32 %v855, %v979
    %v981 = vpop.f32.mrb[0].mxu0
    %982 = vdwg.mxu0
    %v983 = vmax.f32 %v955, 0.0
    %v984 = vmax.f32 %v960, 0.0
    %v985 = vmax.f32 %v965, 0.0
    %v986 = vmax.f32 %v970, 0.0
    %v987 = vmax.f32 %v975, 0.0
    %v988 = vmax.f32 %v980, 0.0
    %v989 = vld [vmem:[#allocation2 + $0x10] sm:$0xff]
    %v990 = vld [vmem:[#allocation2 + $0x20] sm:$0xff]
    %v991 = vld [vmem:[#allocation2 + $0x30] sm:$0xff]
    %v992 = vld [vmem:[#allocation2 + $0x40] sm:$0xff]
    %v993 = vld [vmem:[#allocation2 + $0x50] sm:$0xff]
    %v994 = vld [vmem:[#allocation2 + $0x60] sm:$0xff]
    %v995 = vld [vmem:[#allocation2 + $0x70] sm:$0xff]
    %v996 = vld [vmem:[#allocation2 + $0x80] sm:$0xff]
    %v997 = vld [vmem:[#allocation2 + $0x4] ss:$0 sm:$0xff]
    %vm998 = vcmask 523264
    %v1000 = vsel %vm998, %v983, 0
    %v1003 = vsel %vm998, %v984, 0
    %v1006 = vsel %vm998, %v985, 0
    %v1009 = vsel %vm998, %v986, 0
    %v1012 = vsel %vm998, %v987, 0
    %v1015 = vsel %vm998, %v988, 0
    %1017 = vmatprep.subr.mxu0 0.0
    %1018 = vmatpush1.msra.mxu0 %v989
    %1019 = vmatprep.subr.mxu0 0.0
    %1020 = vmatpush1.msra.mxu0 %v990
    %1021 = vmatprep.subr.mxu0 0.0
    %1022 = vmatpush1.msra.mxu0 %v991
    %1023 = vmatprep.subr.mxu0 0.0
    %1024 = vmatpush1.msra.mxu0 %v992
    %1025 = vmatprep.subr.mxu0 0.0
    %1026 = vmatpush1.msra.mxu0 %v993
    %1027 = vmatprep.subr.mxu0 0.0
    %1028 = vmatpush1.msra.mxu0 %v994
    %1029 = vmatprep.subr.mxu0 0.0
    %1030 = vmatpush1.msra.mxu0 %v995
    %1031 = vmatprep.subr.mxu0 0.0
    %1032 = vmatpush1.msra.mxu0 %v996
    %1033 = vmatprep.subr.mxu0 0.0
    %1034 = vmatpush1.msra.mxu0 0.0
    %1035 = vmatprep.subr.mxu0 0.0
    %1036 = vmatpush1.msra.mxu0 0.0
    %1037 = vmatprep.subr.mxu0 0.0
    %1038 = vmatpush1.msra.mxu0 0.0
    %1039 = vmatprep.subr.mxu0 0.0
    %1040 = vmatpush1.msra.mxu0 0.0
    %1041 = vmatprep.subr.mxu0 0.0
    %1042 = vmatpush1.msra.mxu0 0.0
    %1043 = vmatprep.subr.mxu0 0.0
    %1044 = vmatpush1.msra.mxu0 0.0
    %1045 = vmatprep.subr.mxu0 0.0
    %1046 = vmatpush1.msra.mxu0 0.0
    %1047 = vmatprep.subr.mxu0 0.0
    %1048 = vmatpush1.msra.mxu0 0.0
    %1049 = vmatprep.subr.mxu0 0.0
    %1050 = vmatpush1.msra.mxu0 0.0
    %1051 = vmatprep.subr.mxu0 0.0
    %1052 = vmatpush1.msra.mxu0 0.0
    %1053 = vmatprep.subr.mxu0 0.0
    %1054 = vmatpush1.msra.mxu0 0.0
    %1055 = vmatprep.subr.mxu0 0.0
    %1056 = vmatpush1.msra.mxu0 0.0
    %1057 = vmatprep.subr.mxu0 0.0
    %1058 = vmatpush1.msra.mxu0 0.0
    %1059 = vmatprep.subr.mxu0 0.0
    %1060 = vmatpush1.msra.mxu0 0.0
    %1061 = vmatprep.subr.mxu0 0.0
    %1062 = vmatpush1.msra.mxu0 0.0
    %1063 = vmatprep.subr.mxu0 0.0
    %1064 = vmatpush1.msra.mxu0 0.0
    %1065 = vmatprep.subr.mxu0 0.0
    %1066 = vmatpush1.msra.mxu0 0.0
    %1067 = vmatprep.subr.mxu0 0.0
    %1068 = vmatpush1.msra.mxu0 0.0
    %1069 = vmatprep.subr.mxu0 0.0
    %1070 = vmatpush1.msra.mxu0 0.0
    %1071 = vmatprep.subr.mxu0 0.0
    %1072 = vmatpush1.msra.mxu0 0.0
    %1073 = vmatprep.subr.mxu0 0.0
    %1074 = vmatpush1.msra.mxu0 0.0
    %1075 = vmatprep.subr.mxu0 0.0
    %1076 = vmatpush1.msra.mxu0 0.0
    %1077 = vmatprep.subr.mxu0 0.0
    %1078 = vmatpush1.msra.mxu0 0.0
    %1079 = vmatprep.subr.mxu0 0.0
    %1080 = vmatpush1.msra.mxu0 0.0
    %1081 = vmatprep.mubr.f32.mxu0 0.0
    %1082 = vmatmul.mubr.f32.gmra.mrb[0].mxu0 %v1000
    %v1083 = vpop.f32.mrb[0].mxu0
    %v1084 = vadd.f32 %v997, %v1083
    %v1085 = vpop.f32.mrb[0].mxu0
    %1086 = vmatprep.mubr.f32.mxu0 0.0
    %1087 = vmatmul.mubr.f32.gmra.mrb[0].mxu0 %v1003
    %v1088 = vpop.f32.mrb[0].mxu0
    %v1089 = vadd.f32 %v997, %v1088
    %v1090 = vpop.f32.mrb[0].mxu0
    %1091 = vmatprep.mubr.f32.mxu0 0.0
    %1092 = vmatmul.mubr.f32.gmra.mrb[0].mxu0 %v1006
    %v1093 = vpop.f32.mrb[0].mxu0
    %v1094 = vadd.f32 %v997, %v1093
    %v1095 = vpop.f32.mrb[0].mxu0
    %1096 = vmatprep.mubr.f32.mxu0 0.0
    %1097 = vmatmul.mubr.f32.gmra.mrb[0].mxu0 %v1009
    %v1098 = vpop.f32.mrb[0].mxu0
    %v1099 = vadd.f32 %v997, %v1098
    %v1100 = vpop.f32.mrb[0].mxu0
    %1101 = vmatprep.mubr.f32.mxu0 0.0
    %1102 = vmatmul.mubr.f32.gmra.mrb[0].mxu0 %v1012
    %v1103 = vpop.f32.mrb[0].mxu0
    %v1104 = vadd.f32 %v997, %v1103
    %v1105 = vpop.f32.mrb[0].mxu0
    %1106 = vmatprep.mubr.f32.mxu0 0.0
    %1107 = vmatmul.mubr.f32.gmra.mrb[0].mxu0 %v1015
    %v1108 = vpop.f32.mrb[0].mxu0
    %v1109 = vadd.f32 %v997, %v1108
    %v1110 = vpop.f32.mrb[0].mxu0
    %1111 = vdwg.mxu0
    %v1112 = vmax.f32 %v1084, 0.0
    %v1113 = vmax.f32 %v1089, 0.0
    %v1114 = vmax.f32 %v1094, 0.0
    %v1115 = vmax.f32 %v1099, 0.0
    %v1116 = vmax.f32 %v1104, 0.0
    %v1117 = vmax.f32 %v1109, 0.0
    %v1118 = vld [vmem:[#allocation2 + $0x6] ss:$0 sm:$0xff]
    %v1119 = vld [vmem:[#allocation2 + $0x5] ss:$0 sm:$0xff]
    %v1120 = vmul.f32 %v1112, %v1118
    %v1121 = vmul.f32 %v1113, %v1118
    %v1122 = vmul.f32 %v1114, %v1118
    %v1123 = vmul.f32 %v1115, %v1118
    %v1124 = vmul.f32 %v1116, %v1118
    %v1125 = vmul.f32 %v1117, %v1118
    %vm1126 = vcmask 64512
    %v1127 = vsel %vm1126, %v1120, 0.0
    %1128 = vadd.xlane.f32.xlu0 %v1127
    %v1129 = vpop.xlane.xlu0 %1128
    %v1130 = vsel %vm1126, %v1121, 0.0
    %1131 = vadd.xlane.f32.xlu0 %v1130
    %v1132 = vpop.xlane.xlu0 %1131
    %v1133 = vsel %vm1126, %v1122, 0.0
    %1134 = vadd.xlane.f32.xlu0 %v1133
    %v1135 = vpop.xlane.xlu0 %1134
    %v1136 = vsel %vm1126, %v1123, 0.0
    %1137 = vadd.xlane.f32.xlu0 %v1136
    %v1138 = vpop.xlane.xlu0 %1137
    %v1139 = vsel %vm1126, %v1124, 0.0
    %1140 = vadd.xlane.f32.xlu0 %v1139
    %v1141 = vpop.xlane.xlu0 %1140
    %v1142 = vsel %vm1126, %v1125, 0.0
    %1143 = vadd.xlane.f32.xlu0 %v1142
    %v1144 = vpop.xlane.xlu0 %1143
    %v1145 = vadd.f32 %v1129, %v1119
    %v1146 = vadd.f32 %v1132, %v1119
    %v1147 = vadd.f32 %v1135, %v1119
    %v1148 = vadd.f32 %v1138, %v1119
    %v1149 = vadd.f32 %v1141, %v1119
    %v1150 = vadd.f32 %v1144, %v1119
    %v1151 = vxor.u32 %v1145, 2147483648
    %v1152 = vxor.u32 %v1146, 2147483648
    %v1153 = vxor.u32 %v1147, 2147483648
    %v1154 = vxor.u32 %v1148, 2147483648
    %v1155 = vxor.u32 %v1149, 2147483648
    %v1156 = vxor.u32 %v1150, 2147483648
    %v1157 = vmul.f32 %v1151, 1.442695
    %v1158 = vpow.pop %v1157
    %v1159 = vmul.f32 %v1152, 1.442695
    %v1160 = vpow.pop %v1159
    %v1161 = vmul.f32 %v1153, 1.442695
    %v1162 = vpow.pop %v1161
    %v1163 = vmul.f32 %v1154, 1.442695
    %v1164 = vpow.pop %v1163
    %v1165 = vmul.f32 %v1155, 1.442695
    %v1166 = vpow.pop %v1165
    %v1167 = vmul.f32 %v1156, 1.442695
    %v1168 = vpow.pop %v1167
    %v1169 = vadd.f32 %v1158, 1.0
    %v1170 = vadd.f32 %v1160, 1.0
    %v1171 = vadd.f32 %v1162, 1.0
    %v1172 = vadd.f32 %v1164, 1.0
    %v1173 = vadd.f32 %v1166, 1.0
    %v1174 = vadd.f32 %v1168, 1.0
    %v1175 = vrcp.pop %v1169
    %v1176 = vmul.f32 1.0, %v1175
    %v1177 = vrcp.pop %v1170
    %v1178 = vmul.f32 1.0, %v1177
    %v1179 = vrcp.pop %v1171
    %v1180 = vmul.f32 1.0, %v1179
    %v1181 = vrcp.pop %v1172
    %v1182 = vmul.f32 1.0, %v1181
    %v1183 = vrcp.pop %v1173
    %v1184 = vmul.f32 1.0, %v1183
    %v1185 = vrcp.pop %v1174
    %v1186 = vmul.f32 1.0, %v1185
    %vm1187 = vcmask 7168
    %1188 = vst.msk [vmem:[%s6] sm:$0xff] %vm1187, %v1176
    %1189 = vst.msk [vmem:[%s6 + $0x8] sm:$0xff] %vm1187, %v1178
    %1190 = vst.msk [vmem:[%s6 + $0x10] sm:$0xff] %vm1187, %v1180
    %1191 = vst.msk [vmem:[%s6 + $0x18] sm:$0xff] %vm1187, %v1182
    %1192 = vst.msk [vmem:[%s6 + $0x20] sm:$0xff] %vm1187, %v1184
    %1193 = vst.msk [vmem:[%s6 + $0x28] sm:$0xff] %vm1187, %v1186
    %v1194 = vld [vmem:[%s5] sm:$0xff]
    %v1195 = vld [vmem:[%s5 + $0x8] sm:$0xff]
    %v1196 = vld [vmem:[%s5 + $0x10] sm:$0xff]
    %v1197 = vld [vmem:[%s5 + $0x18] sm:$0xff]
    %v1198 = vld [vmem:[%s5 + $0x20] sm:$0xff]
    %v1199 = vld [vmem:[%s5 + $0x28] sm:$0xff]
    %v1200 = vsub.f32 %v1176, %v1194
    %v1201 = vsub.f32 %v1178, %v1195
    %v1202 = vsub.f32 %v1180, %v1196
    %v1203 = vsub.f32 %v1182, %v1197
    %v1204 = vsub.f32 %v1184, %v1198
    %v1205 = vsub.f32 %v1186, %v1199
    %v1206 = vmul.f32 %v1200, %v1200
    %v1207 = vmul.f32 %v1201, %v1201
    %v1208 = vmul.f32 %v1202, %v1202
    %v1209 = vmul.f32 %v1203, %v1203
    %v1210 = vmul.f32 %v1204, %v1204
    %v1211 = vmul.f32 %v1205, %v1205
    %v1212 = vsel %vm1187, %v1206, 0.0
    %v1213 = vsel %vm1187, %v1207, 0.0
    %v1214 = vadd.f32 %v1212, %v1213
    %v1215 = vsel %vm1187, %v1208, 0.0
    %v1216 = vadd.f32 %v1214, %v1215
    %v1217 = vsel %vm1187, %v1209, 0.0
    %v1218 = vadd.f32 %v1216, %v1217
    %v1219 = vsel %vm1187, %v1210, 0.0
    %v1220 = vadd.f32 %v1218, %v1219
    %v1221 = vsel %vm1187, %v1211, 0.0
    %v1222 = vadd.f32 %v1220, %v1221
    %1223 = vadd.xlane.f32.xlu0 %v1222
    %v1224 = vpop.xlane.xlu0 %1223
    %v1225 = vrot.slane %v1224, 4
    %v1226 = vadd.f32 %v1224, %v1225
    %v1227 = vrot.slane %v1226, 2
    %v1228 = vadd.f32 %v1226, %v1227
    %v1229 = vrot.slane %v1228, 1
    %v1230 = vadd.f32 %v1228, %v1229
    %s1231 = vtos %v1230
    %v1232 = vrcp.pop 48.0
    %s1233 = vtos %v1232
    %s1234 = smul.f32 %s1231, %s1233
    %s1235 = scalar_lea.smem [#allocation5], 0
    %1236 = sst [smem:[%s1235]] %s1234
    // Predicated region
    $region30: #{relation_net_forward.1} parent=1 // pred_check
      _
    $region31: #{relation_net_forward.1} parent=1 // pred_check_branch
      %1238 = sbr.rel (0) target = $region33
    $region32: #{relation_net_forward.1} parent=1 // pred_region
      _
    $region33: #{relation_net_forward.1} parent=1 // pred_fallthru
      _
    // Predicated region
    $region34: #{relation_net_forward.1} parent=1 // pred_check
      _
    $region35: #{relation_net_forward.1} parent=1 // pred_check_branch
      %1240 = sbr.rel (0) target = $region37
    $region36: #{relation_net_forward.1} parent=1 // pred_region
      %s1242 = ssub.s32 16, 16
      %1243 = vsyncadd [#allocation4], %s1242
      %1246 = dma.smem_to_hbm [#allocation5], 16, %s7, [#allocation4]
    $region37: #{relation_net_forward.1} parent=1 // pred_fallthru
      _
    // Predicated region
    $region38: #{relation_net_forward.1} parent=1 // pred_check
      _
    $region39: #{relation_net_forward.1} parent=1 // pred_check_branch
      %1248 = sbr.rel (0) target = $region41
    $region40: #{relation_net_forward.1} parent=1 // pred_region
      _
    $region41: #{relation_net_forward.1} parent=1 // pred_fallthru
      _
    // Predicated region
    $region42: #{relation_net_forward.1} parent=1 // pred_check
      _
    $region43: #{relation_net_forward.1} parent=1 // pred_check_branch
      %1250 = sbr.rel (0) target = $region45
    $region44: #{relation_net_forward.1} parent=1 // pred_region
      %1251 = dma.done [#allocation4], 16
    $region45: #{relation_net_forward.1} parent=1 // pred_fallthru
      _
    %1252 = sfence
    %1253 = vsyncpa [#allocation3], 1
    %1254 = vsyncpa [#allocation4], 1

</llo_original>
